<compile_context>
chip_gen: v5e
topology: v5e:2x2
jax: 0.10.0
libtpu: 0.0.40
codegen_flags: <defaults>
</compile_context>

<pallas_src>
import functools

import jax
import jax.numpy as jnp
from jax import lax
from jax.experimental import pallas as pl
from jax.experimental.pallas import tpu as pltpu

# Contract the lane (pixel) axis of both operands -> no XLU transposes of mask.
_NT_DIMS = (((1,), (1,)), ((), ()))


def _vmem_capacity_bytes():
    try:
        return int(pltpu.get_tpu_info().vmem_capacity_bytes)
    except Exception:  # pragma: no cover - conservative fallback (v7x-sized)
        return 64 * 1024 * 1024


_VMEM_CAP = _vmem_capacity_bytes()
# Scoped VMEM limit: half of the physical capacity, capped; >= 32 MiB.
_VMEM_LIMIT = int(min(max(32 << 20, _VMEM_CAP // 2), 100 << 20))


# --------------------------------------------------------------------------
# Path A: single pass, whole (c, hw) slab resident in VMEM.
# --------------------------------------------------------------------------
def _single_pass_kernel(x_ref, sem_ref, filt_ref, sigma_ref, out_ref, *, c, hw, eps):
    f = filt_ref[...].astype(jnp.float32)                       # (n, c)
    sem = sem_ref[...].astype(jnp.float32)                      # (c, hw)
    x = x_ref[...].astype(jnp.float32)                          # (c, hw)

    # 1x1 conv over channels + softmax over classes (axis 0).
    logits = jnp.dot(f, sem, preferred_element_type=jnp.float32)   # (n, hw)
    m = jnp.max(logits, axis=0, keepdims=True)
    e = jnp.exp(logits - m)
    mask = e * pl.reciprocal(jnp.sum(e, axis=0, keepdims=True), approx=True)

    # Per-(channel, class) statistics via lane-contracting matmuls.
    s1 = lax.dot_general(x, mask, _NT_DIMS,
                         preferred_element_type=jnp.float32)       # (c, n)
    s2 = lax.dot_general(x * x, mask * mask, _NT_DIMS,
                         preferred_element_type=jnp.float32)       # (c, n)
    cnt = lax.dot_general(jnp.ones((1, hw), jnp.float32), mask, _NT_DIMS,
                          preferred_element_type=jnp.float32) + 1e-7  # (1, n)

    mean = s1 / (float(hw) * cnt)                               # mean(hot)/cnt
    # sum_p (x*mask - mean)^2 = s2 - 2*mean*s1 + hw*mean^2
    var_sum = s2 - 2.0 * mean * s1 + float(hw) * mean * mean
    std = jnp.sqrt(jnp.maximum(var_sum, 0.0) / cnt)
    inv = 1.0 / (std + eps)                                     # (c, n)
    coef = jnp.concatenate([inv, mean * inv], axis=0)           # (2c, n)

    # xn = x * (inv @ mask) - (mean*inv) @ mask, fused into one matmul.
    ab = jnp.dot(coef, mask, preferred_element_type=jnp.float32)   # (2c, hw)
    xn = x * ab[:c, :] - ab[c:, :]
    out_ref[...] = (x + sigma_ref[0, 0] * xn).astype(out_ref.dtype)


# --------------------------------------------------------------------------
# Path B: two-phase streaming over hw tiles with small (c, n) accumulators.
# --------------------------------------------------------------------------
def _two_phase_kernel(x_ref, sem_ref, filt_ref, sigma_ref, out_ref,
                      s1_ref, s2_ref, cnt_ref, coef_ref, *maybe_mask,
                      c, hw, tile, eps, cache_mask):
    phase = pl.program_id(1)
    k = pl.program_id(2)
    mask_cache = maybe_mask[0] if cache_mask else None
    ragged = (hw % tile) != 0

    def compute_mask(guard):
        f = filt_ref[...].astype(jnp.float32)                   # (n, c)
        sem = sem_ref[...].astype(jnp.float32)                  # (c, T)
        logits = jnp.dot(f, sem, preferred_element_type=jnp.float32)   # (n, T)
        m = jnp.max(logits, axis=0, keepdims=True)
        e = jnp.exp(logits - m)
        msk = e * pl.reciprocal(jnp.sum(e, axis=0, keepdims=True), approx=True)
        if guard and ragged:
            # Zero the softmax at out-of-range pixel columns (partial last
            # block) so they don't pollute the statistics.
            lane = lax.broadcasted_iota(jnp.int32, msk.shape, 1)
            msk = jnp.where(k * tile + lane < hw, msk, 0.0)
        return msk

    @pl.when(jnp.logical_and(phase == 0, k == 0))
    def _init():
        s1_ref[...] = jnp.zeros_like(s1_ref)
        s2_ref[...] = jnp.zeros_like(s2_ref)
        cnt_ref[...] = jnp.zeros_like(cnt_ref)

    @pl.when(phase == 0)
    def _stats():
        x = x_ref[...].astype(jnp.float32)                      # (c, T)
        msk = compute_mask(guard=True)                          # (n, T)
        if cache_mask:
            mask_cache[k] = msk                                 # persist for phase 1
        t = msk.shape[1]
        s1_ref[...] += lax.dot_general(x, msk, _NT_DIMS,
                                       preferred_element_type=jnp.float32)
        s2_ref[...] += lax.dot_general(x * x, msk * msk, _NT_DIMS,
                                       preferred_element_type=jnp.float32)
        cnt_ref[...] += lax.dot_general(jnp.ones((1, t), jnp.float32), msk,
                                        _NT_DIMS,
                                        preferred_element_type=jnp.float32)

    @pl.when(jnp.logical_and(phase == 1, k == 0))
    def _finalize():
        s1 = s1_ref[...]                                        # (c, n)
        s2 = s2_ref[...]                                        # (c, n)
        cnt = cnt_ref[...] + 1e-7                               # (1, n)
        mean = s1 / (float(hw) * cnt)
        var_sum = s2 - 2.0 * mean * s1 + float(hw) * mean * mean
        std = jnp.sqrt(jnp.maximum(var_sum, 0.0) / cnt)
        inv = 1.0 / (std + eps)
        coef_ref[...] = jnp.concatenate([inv, mean * inv], axis=0)   # (2c, n)

    @pl.when(phase == 1)
    def _apply():
        x = x_ref[...].astype(jnp.float32)
        if cache_mask:
            msk = mask_cache[k]
        else:
            # No lane guard needed: out-of-range output columns are dropped by
            # the bounded write-back anyway.
            msk = compute_mask(guard=False)
        ab = jnp.dot(coef_ref[...], msk, preferred_element_type=jnp.float32)  # (2c, T)
        xn = x * ab[:c, :] - ab[c:, :]
        out_ref[...] = (x + sigma_ref[0, 0] * xn).astype(out_ref.dtype)


# --------------------------------------------------------------------------
# Tiling heuristics (generation-aware via VMEM capacity query).
# --------------------------------------------------------------------------
def _single_pass_bytes(c, n, hw, itemsize):
    # Double-buffered x/sem/out blocks + f32 in-kernel temporaries
    # (x, mask, logits, e, ab, xn + slack), per pixel column.
    return hw * (3 * 2 * c * itemsize + (5 * c + 4 * n) * 4)


def _choose_tile(c, n, hw, itemsize, vmem_cap=_VMEM_CAP):
    """Streaming hw tile: multiple of 128, capped at 2048 lanes, VMEM-budgeted."""
    hw128 = -(-hw // 128) * 128
    budget = max(2 << 20, vmem_cap // 8)       # per-tile streaming working set
    per_col = 3 * 2 * c * itemsize + (5 * c + 4 * n) * 4
    cols = max(128, budget // per_col)
    tile = min(2048, hw128, (cols // 128) * 128)
    return max(128, tile)


@functools.partial(jax.jit,
                   static_argnames=("eps", "orth_lambda", "force_two_phase",
                                    "force_tile"))
def attention_normalization(x, sem_embed, entity_filters, sigma, *, eps=1e-5,
                            orth_lambda=0.001, force_two_phase=False,
                            force_tile=None):
    b, c, h, w = x.shape
    n = entity_filters.shape[0]
    hw = h * w
    itemsize = jnp.dtype(x.dtype).itemsize

    filt = entity_filters.reshape(n, c)                        # (n, c, 1, 1) -> (n, c)
    sig = sigma.reshape(1, 1).astype(jnp.float32)              # SMEM scalar

    # Metadata-only reshapes (h, w contiguous) -> no extra HBM passes.
    x2 = x.reshape(b, c, hw)
    sem2 = sem_embed.reshape(b, c, hw)

    single_budget = min(24 << 20, _VMEM_CAP // 4)
    use_single = (not force_two_phase) and (
        _single_pass_bytes(c, n, hw, itemsize) <= single_budget)

    if use_single:
        out = pl.pallas_call(
            functools.partial(_single_pass_kernel, c=c, hw=hw, eps=eps),
            out_shape=jax.ShapeDtypeStruct((b, c, hw), x.dtype),
            grid_spec=pltpu.PrefetchScalarGridSpec(
                num_scalar_prefetch=0,
                grid=(b,),
                in_specs=[
                    pl.BlockSpec((None, c, hw), lambda i: (i, 0, 0)),   # x
                    pl.BlockSpec((None, c, hw), lambda i: (i, 0, 0)),   # sem_embed
                    pl.BlockSpec((n, c), lambda i: (0, 0)),             # filters
                    pl.BlockSpec(memory_space=pltpu.MemorySpace.SMEM),  # sigma
                ],
                out_specs=pl.BlockSpec((None, c, hw), lambda i: (i, 0, 0)),
            ),
            compiler_params=pltpu.CompilerParams(
                dimension_semantics=("parallel",),
                vmem_limit_bytes=_VMEM_LIMIT),
        )(x2, sem2, filt, sig)
    else:
        if force_tile is not None:
            tile = max(128, (int(force_tile) // 128) * 128)
        else:
            tile = _choose_tile(c, n, hw, itemsize)
        tile = min(tile, -(-hw // 128) * 128)
        num_k = -(-hw // tile)

        mask_bytes = num_k * tile * n * 4
        cache_mask = mask_bytes <= _VMEM_CAP // 4   # else: recompute in phase 1

        x_idx = lambda i, p, k: (i, 0, k)
        if cache_mask:
            # Phase 1 never reads sem: keep its block pointed at the block that
            # is already resident from the end of phase 0 -> zero extra DMA.
            sem_idx = lambda i, p, k, _nk=num_k: (i, 0, k * (1 - p) + (_nk - 1) * p)
        else:
            sem_idx = lambda i, p, k: (i, 0, k)
        # p*k keeps every stats-phase step pointed at block (i, 0, 0) so no
        # unwritten output block is ever flushed; phase 1 writes every tile.
        out_idx = lambda i, p, k: (i, 0, p * k)

        scratch = [
            pltpu.VMEM((c, n), jnp.float32),       # s1
            pltpu.VMEM((c, n), jnp.float32),       # s2
            pltpu.VMEM((1, n), jnp.float32),       # cnt
            pltpu.VMEM((2 * c, n), jnp.float32),   # [inv; mean*inv]
        ]
        if cache_mask:
            scratch.append(pltpu.VMEM((num_k, n, tile), jnp.float32))

        kernel = functools.partial(_two_phase_kernel, c=c, hw=hw, tile=tile,
                                   eps=eps, cache_mask=cache_mask)

        out = pl.pallas_call(
            kernel,
            out_shape=jax.ShapeDtypeStruct((b, c, hw), x.dtype),
            grid_spec=pltpu.PrefetchScalarGridSpec(
                num_scalar_prefetch=0,
                grid=(b, 2, num_k),
                in_specs=[
                    pl.BlockSpec((None, c, tile), x_idx),               # x
                    pl.BlockSpec((None, c, tile), sem_idx),             # sem_embed
                    pl.BlockSpec((n, c), lambda i, p, k: (0, 0)),       # filters
                    pl.BlockSpec(memory_space=pltpu.MemorySpace.SMEM),  # sigma
                ],
                out_specs=pl.BlockSpec((None, c, tile), out_idx),
                scratch_shapes=scratch,
            ),
            compiler_params=pltpu.CompilerParams(
                dimension_semantics=("parallel", "arbitrary", "arbitrary"),
                vmem_limit_bytes=_VMEM_LIMIT),
        )(x2, sem2, filt, sig)

    out = out.reshape(b, c, h, w)

    # orth_loss depends only on the filters: sum(f @ f.T - I) = sum(f @ f.T) - n.
    fws = jnp.dot(filt.astype(jnp.float32), filt.astype(jnp.float32).T,
                  precision=lax.Precision.HIGHEST,
                  preferred_element_type=jnp.float32)
    orth_loss = orth_lambda * (jnp.sum(fws) - jnp.float32(n))
    return out, orth_loss


def _reference(x, sem_embed, entity_filters, sigma, eps=1e-5, orth_lambda=0.001):
    """Pure-JAX transcription of the PyTorch forward (for validation)."""
    b, c, h, w = x.shape
    n = entity_filters.shape[0]
    fw = entity_filters.reshape(n, c).astype(jnp.float32)
    logits = jnp.einsum("nc,bchw->bnhw", fw, sem_embed.astype(jnp.float32),
                        precision=lax.Precision.HIGHEST)
    mask = jax.nn.softmax(logits, axis=1).reshape(b, 1, n, h, w)
    xe = x.astype(jnp.float32).reshape(b, c, 1, h, w)
    hot = xe * mask
    cnt = jnp.sum(mask, axis=(-1, -2), keepdims=True) + 1e-7
    mean = jnp.mean(hot, axis=(-1, -2), keepdims=True) / cnt
    std = jnp.sqrt(jnp.sum((hot - mean) ** 2, axis=(-1, -2), keepdims=True) / cnt)
    xn = jnp.sum((xe - mean) / (std + eps) * mask, axis=2)
    out = x + sigma[0] * xn
    fws = jnp.dot(fw, fw.T, precision=lax.Precision.HIGHEST,
                  preferred_element_type=jnp.float32)
    orth = orth_lambda * (jnp.sum(fws) - jnp.float32(n))
    return out, orth


if __name__ == "__main__":
    key = jax.random.PRNGKey(0)
    k1, k2, k3 = jax.random.split(key, 3)

    b, c, n = 2, 32, 16    # dim=32, nClass=16 (small synthetic shapes)
    entity_filters = jax.random.normal(k3, (n, c, 1, 1), jnp.float32)
    sigma = jnp.ones((1,), jnp.float32)

    # --- Test 1: single-pass path (whole (c, hw) slab VMEM resident) ---
    h, w = 8, 8
    x = jax.random.normal(k1, (b, c, h, w), jnp.float32)
    sem_embed = jax.random.normal(k2, (b, c, h, w), jnp.float32)
    x_out, orth_loss = attention_normalization(x, sem_embed, entity_filters, sigma)
    jax.block_until_ready((x_out, orth_loss))
    assert x_out.shape == (b, c, h, w)
    assert orth_loss.shape == ()
    x_ref, orth_ref = _reference(x, sem_embed, entity_filters, sigma)
    assert jnp.allclose(x_out, x_ref, atol=5e-2, rtol=5e-2), (
        float(jnp.max(jnp.abs(x_out - x_ref))))
    assert jnp.allclose(orth_loss, orth_ref, atol=1e-3, rtol=1e-3)

    # --- Test 2: two-phase streaming path with cached softmax mask (forced) ---
    h2, w2 = 16, 16
    xb = jax.random.normal(k1, (b, c, h2, w2), jnp.float32)
    semb = jax.random.normal(k2, (b, c, h2, w2), jnp.float32)
    xb_out, orth2 = attention_normalization(xb, semb, entity_filters, sigma,
                                            force_two_phase=True, force_tile=128)
    jax.block_until_ready((xb_out, orth2))
    xb_ref, orth2_ref = _reference(xb, semb, entity_filters, sigma)
    assert jnp.allclose(xb_out, xb_ref, atol=5e-2, rtol=5e-2), (
        float(jnp.max(jnp.abs(xb_out - xb_ref))))
    assert jnp.allclose(orth2, orth2_ref, atol=1e-3, rtol=1e-3)

    print("KERNEL_OK")
</pallas_src>

<mosaic_0001>
module attributes {stable_mosaic.version = 11 : i64} {
  func.func @_single_pass_kernel(%arg0: i32, %arg1: memref<1x32x64xf32, #tpu.memory_space<vmem>>, %arg2: memref<1x32x64xf32, #tpu.memory_space<vmem>>, %arg3: memref<16x32xf32, #tpu.memory_space<vmem>>, %arg4: memref<1x1xf32, #tpu.memory_space<smem>>, %arg5: memref<1x32x64xf32, #tpu.memory_space<vmem>>) attributes {dimension_semantics = [#tpu.dimension_semantics<parallel>], iteration_bounds = array<i64: 2>, scalar_prefetch = 0 : i64, scratch_operands = 0 : i64, tpu.core_type = #tpu.core_type<tc>, window_params = [{transform_indices = @transform_0, window_bounds = array<i64: 1, 32, 64>}, {transform_indices = @transform_1, window_bounds = array<i64: 1, 32, 64>}, {pipeline_mode = #tpu.pipeline_mode<synchronous>, transform_indices = @transform_2, window_bounds = array<i64: 16, 32>}, {transform_indices = @transform_3, window_bounds = array<i64: 1, 1>}, {transform_indices = @transform_4, window_bounds = array<i64: 1, 32, 64>}]} {
    %c0 = arith.constant 0 : index
    %c0_0 = arith.constant 0 : index
    %0 = vector.load %arg3[%c0, %c0_0] : memref<16x32xf32, #tpu.memory_space<vmem>>, vector<16x32xf32>
    %c0_1 = arith.constant 0 : index
    %c0_2 = arith.constant 0 : index
    %c0_3 = arith.constant 0 : index
    %1 = vector.load %arg2[%c0_1, %c0_2, %c0_3] : memref<1x32x64xf32, #tpu.memory_space<vmem>>, vector<1x32x64xf32>
    %2 = vector.shape_cast %1 : vector<1x32x64xf32> to vector<32x64xf32>
    %c0_4 = arith.constant 0 : index
    %c0_5 = arith.constant 0 : index
    %c0_6 = arith.constant 0 : index
    %3 = vector.load %arg1[%c0_4, %c0_5, %c0_6] : memref<1x32x64xf32, #tpu.memory_space<vmem>>, vector<1x32x64xf32>
    %4 = vector.shape_cast %3 : vector<1x32x64xf32> to vector<32x64xf32>
    %cst = arith.constant dense<0.000000e+00> : vector<16x64xf32>
    %5 = tpu.matmul %0, %2, %cst {dimension_numbers = #tpu.dot_dimension_numbers<[1], [0], [0], [1], [0, 0, 1, 1], [], []>} : vector<16x32xf32>, vector<32x64xf32>, vector<16x64xf32> -> vector<16x64xf32>
    %cst_7 = arith.constant dense<0xFF800000> : vector<64xf32>
    %6 = vector.multi_reduction <maximumf>, %5, %cst_7 [0] : vector<16x64xf32> to vector<64xf32>
    %7 = vector.shape_cast %6 : vector<64xf32> to vector<1x64xf32>
    %8 = vector.broadcast %7 : vector<1x64xf32> to vector<16x64xf32>
    %9 = arith.subf %5, %8 : vector<16x64xf32>
    %10 = math.exp %9 : vector<16x64xf32>
    %cst_8 = arith.constant dense<0.000000e+00> : vector<64xf32>
    %11 = vector.multi_reduction <add>, %10, %cst_8 [0] : vector<16x64xf32> to vector<64xf32>
    %12 = vector.shape_cast %11 : vector<64xf32> to vector<1x64xf32>
    %13 = tpu.reciprocal %12 {approx = true} : vector<1x64xf32> -> vector<1x64xf32>
    %14 = vector.broadcast %13 : vector<1x64xf32> to vector<16x64xf32>
    %15 = arith.mulf %10, %14 : vector<16x64xf32>
    %cst_9 = arith.constant dense<0.000000e+00> : vector<32x16xf32>
    %16 = tpu.matmul %4, %15, %cst_9 {dimension_numbers = #tpu.dot_dimension_numbers<[1], [1], [0], [0], [0, 0, 1, 0], [], []>} : vector<32x64xf32>, vector<16x64xf32>, vector<32x16xf32> -> vector<32x16xf32>
    %17 = arith.mulf %4, %4 : vector<32x64xf32>
    %18 = arith.mulf %15, %15 : vector<16x64xf32>
    %cst_10 = arith.constant dense<0.000000e+00> : vector<32x16xf32>
    %19 = tpu.matmul %17, %18, %cst_10 {dimension_numbers = #tpu.dot_dimension_numbers<[1], [1], [0], [0], [0, 0, 1, 0], [], []>} : vector<32x64xf32>, vector<16x64xf32>, vector<32x16xf32> -> vector<32x16xf32>
    %cst_11 = arith.constant 1.000000e+00 : f32
    %20 = vector.broadcast %cst_11 : f32 to vector<1x64xf32>
    %cst_12 = arith.constant dense<0.000000e+00> : vector<1x16xf32>
    %21 = tpu.matmul %20, %15, %cst_12 {dimension_numbers = #tpu.dot_dimension_numbers<[1], [1], [0], [0], [0, 0, 1, 0], [], []>} : vector<1x64xf32>, vector<16x64xf32>, vector<1x16xf32> -> vector<1x16xf32>
    %cst_13 = arith.constant 1.000000e-07 : f32
    %22 = vector.broadcast %cst_13 : f32 to vector<1x16xf32>
    %23 = arith.addf %21, %22 : vector<1x16xf32>
    %cst_14 = arith.constant 6.400000e+01 : f32
    %24 = vector.broadcast %cst_14 : f32 to vector<1x16xf32>
    %25 = arith.mulf %24, %23 : vector<1x16xf32>
    %26 = vector.broadcast %25 : vector<1x16xf32> to vector<32x16xf32>
    %27 = arith.divf %16, %26 : vector<32x16xf32>
    %cst_15 = arith.constant 2.000000e+00 : f32
    %28 = vector.broadcast %cst_15 : f32 to vector<32x16xf32>
    %29 = arith.mulf %28, %27 : vector<32x16xf32>
    %30 = arith.mulf %29, %16 : vector<32x16xf32>
    %31 = arith.subf %19, %30 : vector<32x16xf32>
    %cst_16 = arith.constant 6.400000e+01 : f32
    %32 = vector.broadcast %cst_16 : f32 to vector<32x16xf32>
    %33 = arith.mulf %32, %27 : vector<32x16xf32>
    %34 = arith.mulf %33, %27 : vector<32x16xf32>
    %35 = arith.addf %31, %34 : vector<32x16xf32>
    %cst_17 = arith.constant 0.000000e+00 : f32
    %36 = vector.broadcast %cst_17 : f32 to vector<32x16xf32>
    %37 = arith.maximumf %35, %36 : vector<32x16xf32>
    %38 = vector.broadcast %23 : vector<1x16xf32> to vector<32x16xf32>
    %39 = arith.divf %37, %38 : vector<32x16xf32>
    %40 = math.sqrt %39 : vector<32x16xf32>
    %cst_18 = arith.constant 9.99999974E-6 : f32
    %41 = vector.broadcast %cst_18 : f32 to vector<32x16xf32>
    %42 = arith.addf %40, %41 : vector<32x16xf32>
    %cst_19 = arith.constant 1.000000e+00 : f32
    %43 = vector.broadcast %cst_19 : f32 to vector<32x16xf32>
    %44 = arith.divf %43, %42 : vector<32x16xf32>
    %45 = arith.mulf %27, %44 : vector<32x16xf32>
    %46 = tpu.concatenate %44, %45 in 0 : vector<32x16xf32>, vector<32x16xf32> -> vector<64x16xf32>
    %cst_20 = arith.constant dense<0.000000e+00> : vector<64x64xf32>
    %47 = tpu.matmul %46, %15, %cst_20 {dimension_numbers = #tpu.dot_dimension_numbers<[1], [0], [0], [1], [0, 0, 1, 1], [], []>} : vector<64x16xf32>, vector<16x64xf32>, vector<64x64xf32> -> vector<64x64xf32>
    %48 = vector.extract_strided_slice %47 {offsets = [0, 0], sizes = [32, 64], strides = [1, 1]} : vector<64x64xf32> to vector<32x64xf32>
    %49 = arith.mulf %4, %48 : vector<32x64xf32>
    %50 = vector.extract_strided_slice %47 {offsets = [32, 0], sizes = [32, 64], strides = [1, 1]} : vector<64x64xf32> to vector<32x64xf32>
    %51 = arith.subf %49, %50 : vector<32x64xf32>
    %c0_21 = arith.constant 0 : index
    %c0_22 = arith.constant 0 : index
    %52 = memref.load %arg4[%c0_21, %c0_22] : memref<1x1xf32, #tpu.memory_space<smem>>
    %53 = vector.broadcast %52 : f32 to vector<32x64xf32>
    %54 = arith.mulf %53, %51 : vector<32x64xf32>
    %55 = arith.addf %4, %54 : vector<32x64xf32>
    %c0_23 = arith.constant 0 : index
    %c0_24 = arith.constant 0 : index
    %c0_25 = arith.constant 0 : index
    %56 = vector.load %arg5[%c0_23, %c0_24, %c0_25] : memref<1x32x64xf32, #tpu.memory_space<vmem>>, vector<1x32x64xf32>
    %57 = vector.shape_cast %56 : vector<1x32x64xf32> to vector<32x64xf32>
    %58 = vector.shape_cast %55 : vector<32x64xf32> to vector<1x32x64xf32>
    tpu.vector_store %arg5[%c0_23, %c0_24, %c0_25], %58 {strides = array<i32>} : memref<1x32x64xf32, #tpu.memory_space<vmem>>, vector<1x32x64xf32>,
    return
  }
  func.func @transform_0(%arg0: i32) -> (i32, i32, i32) {
    %c0_i32 = arith.constant 0 : i32
    %c0_i32_0 = arith.constant 0 : i32
    %c0_i32_1 = arith.constant 0 : i32
    return %arg0, %c0_i32, %c0_i32_0 : i32, i32, i32
  }
  func.func @transform_1(%arg0: i32) -> (i32, i32, i32) {
    %c0_i32 = arith.constant 0 : i32
    %c0_i32_0 = arith.constant 0 : i32
    %c0_i32_1 = arith.constant 0 : i32
    return %arg0, %c0_i32, %c0_i32_0 : i32, i32, i32
  }
  func.func @transform_2(%arg0: i32) -> (i32, i32) {
    %c0_i32 = arith.constant 0 : i32
    %c0_i32_0 = arith.constant 0 : i32
    %c0_i32_1 = arith.constant 0 : i32
    return %c0_i32, %c0_i32_0 : i32, i32
  }
  func.func @transform_3(%arg0: i32) -> (i32, i32) {
    %c0_i32 = arith.constant 0 : i32
    %c0_i32_0 = arith.constant 0 : i32
    %c0_i32_1 = arith.constant 0 : i32
    return %c0_i32, %c0_i32_0 : i32, i32
  }
  func.func @transform_4(%arg0: i32) -> (i32, i32, i32) {
    %c0_i32 = arith.constant 0 : i32
    %c0_i32_0 = arith.constant 0 : i32
    %c0_i32_1 = arith.constant 0 : i32
    return %arg0, %c0_i32, %c0_i32_0 : i32, i32, i32
  }
}

</mosaic_0001>

<llo_original>
// kernel: attention_normalization.1
$region0: #{attention_normalization.1}
  #allocation0 [shape = 'u32[]', space=smem, size = 0x4, offset = 0x4, fixed_abs, tag = 'smem constant byte address 0x4 - core index']
  #allocation1 [shape = 'u32[72,128]{1,0:T(1,128)}', space=vmem, size = 0x9000, scoped, tag = 'internal scratch']
  #allocation2 [shape = 'f32[1,1]{1,0:T(1,128)S(6)}', space=smem, size = 0x200, scoped, tag = 'scoped memory for attention_normalization.1']
  %s0 = inlined_call_operand.vmem [shape: f32[2,32,64], index: 0, kind: input, shape index: {}]
  %s1 = inlined_call_operand.vmem [shape: f32[2,32,64], index: 1, kind: input, shape index: {}]
  %s2 = inlined_call_operand.vmem [shape: f32[16,32], index: 2, kind: input, shape index: {}]
  %s3 = inlined_call_operand.<no memory space> [shape: f32[1,1], index: 3, kind: input, shape index: {}]
  %s4 = inlined_call_operand.vmem [shape: f32[2,32,64], index: 4, kind: output, shape index: {}]
  %s5 = sld [smem:[#allocation0]]
  $region49: #{attention_normalization.1} parent=0
    _
  %s7 = ssub.s32 1, %s5
  %s8 = scalar_select 0, %s7, %s5
  %9 = sst [smem:[#allocation2]] %s3
  loop: start=0, step=1, limit=4
  $region2: #{attention_normalization.1} parent=0 // loop_pre_header
    _
  $region3: #{attention_normalization.1} parent=0 // loop_header
    %s11 = sphi 0, %s15
    %p12 = scmp.ge.s32.totalorder %s11, 4
    %s21 = sphi 0, %s23
    %s24 = sphi 0, %s21
    %s25 = sphi 0, %s24
    %s41 = sphi 0, %s25
    %s47 = sphi 0, %s49
    %s50 = sphi 0, %s47
    %s51 = sphi 0, %s50
    %s67 = sphi 0, %s51
    %s71 = sphi 0, %s71
    %s73 = sphi 0, %s71
    %s74 = sphi 0, %s73
    %s88 = sphi 0, %s74
    %s92 = sphi 0, %s92
    %s94 = sphi 0, %s92
    %s95 = sphi 0, %s94
    %s109 = sphi 0, %s95
    %s115 = sphi 0, %s117
    %s118 = sphi 0, %s115
    %s119 = sphi 0, %s118
    %s135 = sphi 0, %s119
  $region4: #{attention_normalization.1} parent=0 // loop_header_branch
    %14 = sbr.rel (%p12) target = $region8
  $region5: #{attention_normalization.1} parent=0 // loop_body
    %s16 = ssub.s32 %s11, 1
    %s17 = ssub.s32 %s11, 2
    %s18 = sadd.s32 %s11, 1
    %s19 = ssub.s32 %s11, %s18
    %p20 = scmp.eq.s32.totalorder %s19, 0
    %s22 = sadd.s32 %s21, 1
    %s23 = scalar_select %p20, %s21, %s22
    %p26 = pneg %p20
    %p27 = scmp.eq.s32.totalorder %s11, 1
    %p28 = por %p26, %p27
    %p29 = scmp.ne.s32.totalorder %s21, %s24
    %p30 = scmp.eq.s32.totalorder %s11, 0
    %p31 = por %p29, %p30
    %p32 = scmp.ne.s32.totalorder %s21, %s24
    %p33 = scmp.eq.s32.totalorder %s16, 1
    %p34 = por %p32, %p33
    %p35 = scmp.ne.s32.totalorder %s24, %s25
    %p36 = scmp.eq.s32.totalorder %s16, 0
    %p37 = por %p35, %p36
    %p38 = scmp.ne.s32.totalorder %s24, %s25
    %p39 = scmp.eq.s32.totalorder %s17, 1
    %p40 = por %p38, %p39
    %p42 = scmp.ne.s32.totalorder %s25, %s41
    %p43 = scmp.eq.s32.totalorder %s17, 0
    %p44 = por %p42, %p43
    %s45 = ssub.s32 %s11, %s18
    %p46 = scmp.eq.s32.totalorder %s45, 0
    %s48 = sadd.s32 %s47, 1
    %s49 = scalar_select %p46, %s47, %s48
    %p52 = pneg %p46
    %p53 = scmp.eq.s32.totalorder %s11, 1
    %p54 = por %p52, %p53
    %p55 = scmp.ne.s32.totalorder %s47, %s50
    %p56 = scmp.eq.s32.totalorder %s11, 0
    %p57 = por %p55, %p56
    %p58 = scmp.ne.s32.totalorder %s47, %s50
    %p59 = scmp.eq.s32.totalorder %s16, 1
    %p60 = por %p58, %p59
    %p61 = scmp.ne.s32.totalorder %s50, %s51
    %p62 = scmp.eq.s32.totalorder %s16, 0
    %p63 = por %p61, %p62
    %p64 = scmp.ne.s32.totalorder %s50, %s51
    %p65 = scmp.eq.s32.totalorder %s17, 1
    %p66 = por %p64, %p65
    %p68 = scmp.ne.s32.totalorder %s51, %s67
    %p69 = scmp.eq.s32.totalorder %s17, 0
    %p70 = por %p68, %p69
    %s72 = sadd.s32 %s71, 1
    %p75 = scmp.eq.s32.totalorder %s11, 1
    %p76 = scmp.ne.s32.totalorder %s71, %s73
    %p77 = scmp.eq.s32.totalorder %s11, 0
    %p78 = por %p76, %p77
    %p79 = scmp.ne.s32.totalorder %s71, %s73
    %p80 = scmp.eq.s32.totalorder %s16, 1
    %p81 = por %p79, %p80
    %p82 = scmp.ne.s32.totalorder %s73, %s74
    %p83 = scmp.eq.s32.totalorder %s16, 0
    %p84 = por %p82, %p83
    %p85 = scmp.ne.s32.totalorder %s73, %s74
    %p86 = scmp.eq.s32.totalorder %s17, 1
    %p87 = por %p85, %p86
    %p89 = scmp.ne.s32.totalorder %s74, %s88
    %p90 = scmp.eq.s32.totalorder %s17, 0
    %p91 = por %p89, %p90
    %s93 = sadd.s32 %s92, 1
    %p96 = scmp.eq.s32.totalorder %s11, 1
    %p97 = scmp.ne.s32.totalorder %s92, %s94
    %p98 = scmp.eq.s32.totalorder %s11, 0
    %p99 = por %p97, %p98
    %p100 = scmp.ne.s32.totalorder %s92, %s94
    %p101 = scmp.eq.s32.totalorder %s16, 1
    %p102 = por %p100, %p101
    %p103 = scmp.ne.s32.totalorder %s94, %s95
    %p104 = scmp.eq.s32.totalorder %s16, 0
    %p105 = por %p103, %p104
    %p106 = scmp.ne.s32.totalorder %s94, %s95
    %p107 = scmp.eq.s32.totalorder %s17, 1
    %p108 = por %p106, %p107
    %p110 = scmp.ne.s32.totalorder %s95, %s109
    %p111 = scmp.eq.s32.totalorder %s17, 0
    %p112 = por %p110, %p111
    %s113 = ssub.s32 %s11, %s18
    %p114 = scmp.eq.s32.totalorder %s113, 0
    %s116 = sadd.s32 %s115, 1
    %s117 = scalar_select %p114, %s115, %s116
    %p120 = pneg %p114
    %p121 = scmp.eq.s32.totalorder %s11, 1
    %p122 = por %p120, %p121
    %p123 = scmp.ne.s32.totalorder %s115, %s118
    %p124 = scmp.eq.s32.totalorder %s11, 0
    %p125 = por %p123, %p124
    %p126 = scmp.ne.s32.totalorder %s115, %s118
    %p127 = scmp.eq.s32.totalorder %s16, 1
    %p128 = por %p126, %p127
    %p129 = scmp.ne.s32.totalorder %s118, %s119
    %p130 = scmp.eq.s32.totalorder %s16, 0
    %p131 = por %p129, %p130
    %p132 = scmp.ne.s32.totalorder %s118, %s119
    %p133 = scmp.eq.s32.totalorder %s17, 1
    %p134 = por %p132, %p133
    %p136 = scmp.ne.s32.totalorder %s119, %s135
    %p137 = scmp.eq.s32.totalorder %s17, 0
    %p138 = por %p136, %p137
    %p139 = scmp.le.s32.totalorder 1, %s11
    %p140 = scmp.lt.s32.totalorder %s11, 3
    %p141 = pnand %p139, %p140
    %p142 = pneg %p141
    // Predicated region
    $region9: #{attention_normalization.1} parent=5 // pred_check
      _
    $region10: #{attention_normalization.1} parent=5 // pred_check_branch
      %144 = sbr.rel (%p141) target = $region12
    $region11: #{attention_normalization.1} parent=5 // pred_region
      %s145 = ssub.s32 %s11, 1
      // Predicated region
      $region13: #{attention_normalization.1} parent=11 // pred_check
        %p146 = pneg %p84
      $region14: #{attention_normalization.1} parent=11 // pred_check_branch
        %148 = sbr.rel (%p146) target = $region16
      $region15: #{attention_normalization.1} parent=11 // pred_region
        _
      $region16: #{attention_normalization.1} parent=11 // pred_fallthru
        _
      // Predicated region
      $region17: #{attention_normalization.1} parent=11 // pred_check
        %p149 = pneg %p105
      $region18: #{attention_normalization.1} parent=11 // pred_check_branch
        %151 = sbr.rel (%p149) target = $region20
      $region19: #{attention_normalization.1} parent=11 // pred_region
        _
      $region20: #{attention_normalization.1} parent=11 // pred_fallthru
        _
    $region12: #{attention_normalization.1} parent=5 // pred_fallthru
      _
    %p152 = scmp.lt.s32.totalorder %s11, 2
    // Predicated region
    $region21: #{attention_normalization.1} parent=5 // pred_check
      %p153 = pneg %p152
    $region22: #{attention_normalization.1} parent=5 // pred_check_branch
      %155 = sbr.rel (%p153) target = $region24
    $region23: #{attention_normalization.1} parent=5 // pred_region
      // Predicated region
      $region25: #{attention_normalization.1} parent=23 // pred_check
        %p156 = pneg %p31
      $region26: #{attention_normalization.1} parent=23 // pred_check_branch
        %158 = sbr.rel (%p156) target = $region28
      $region27: #{attention_normalization.1} parent=23 // pred_region
        %p159 = scmp.lt.s32.totalorder %s11, 1
        %s160 = scalar_select %p159, %s11, 1
        %s161 = smul.addr %s160, 4
        %s162 = smul.addr %s161, 8
        %s163 = scalar_lea.vmem %s0, %s162
      $region28: #{attention_normalization.1} parent=23 // pred_fallthru
        _
      // Predicated region
      $region29: #{attention_normalization.1} parent=23 // pred_check
        %p164 = pneg %p57
      $region30: #{attention_normalization.1} parent=23 // pred_check_branch
        %166 = sbr.rel (%p164) target = $region32
      $region31: #{attention_normalization.1} parent=23 // pred_region
        %p167 = scmp.lt.s32.totalorder %s11, 1
        %s168 = scalar_select %p167, %s11, 1
        %s169 = smul.addr %s168, 4
        %s170 = smul.addr %s169, 8
        %s171 = scalar_lea.vmem %s1, %s170
      $region32: #{attention_normalization.1} parent=23 // pred_fallthru
        _
    $region24: #{attention_normalization.1} parent=5 // pred_fallthru
      _
    %p172 = scmp.le.s32.totalorder 1, %s11
    %p173 = scmp.lt.s32.totalorder %s11, 3
    %p174 = pnand %p172, %p173
    %p175 = pneg %p174
    // Predicated region
    $region33: #{attention_normalization.1} parent=5 // pred_check
      _
    $region34: #{attention_normalization.1} parent=5 // pred_check_branch
      %177 = sbr.rel (%p174) target = $region36
    $region35: #{attention_normalization.1} parent=5 // pred_region
      %s178 = ssub.s32 %s11, 1
      %p179 = scmp.lt.s32.totalorder %s16, 1
      %s180 = scalar_select %p179, %s16, 1
      %s181 = smul.addr %s180, 4
      %s182 = smul.addr %s181, 8
      %s183 = scalar_lea.vmem %s0, %s182
      %p184 = pneg %p37
      %p185 = pneg %p34
      %p186 = scmp.lt.s32.totalorder %s16, 1
      %s187 = scalar_select %p186, %s16, 1
      %s188 = smul.addr %s187, 4
      %s189 = smul.addr %s188, 8
      %s190 = scalar_lea.vmem %s1, %s189
      %p191 = pneg %p63
      %p192 = pneg %p60
      %p193 = pneg %p84
      %p194 = pneg %p81
      %p195 = pneg %p105
      %p196 = pneg %p102
      %p197 = pneg %p131
      %p198 = pneg %p128
      %p199 = scmp.lt.s32.totalorder %s16, 1
      %s200 = scalar_select %p199, %s16, 1
      %s201 = smul.addr %s200, 4
      %s202 = smul.addr %s201, 8
      %s203 = scalar_lea.vmem %s4, %s202
      %p204 = scmp.lt.s32.totalorder %s16, 1
      %s205 = scalar_select %p204, %s16, 1
      %s206 = smul.addr %s205, 4
      %s207 = smul.addr %s206, 8
      %s208 = scalar_lea.vmem %s0, %s207
      %p209 = scmp.lt.s32.totalorder %s16, 1
      %s210 = scalar_select %p209, %s16, 1
      %s211 = smul.addr %s210, 4
      %s212 = smul.addr %s211, 8
      %s213 = scalar_lea.vmem %s1, %s212
      %p214 = scmp.lt.s32.totalorder %s16, 1
      %s215 = scalar_select %p214, %s16, 1
      %s216 = smul.addr %s215, 4
      %s217 = smul.addr %s216, 8
      %s218 = scalar_lea.vmem %s4, %s217
      %v219 = vld [vmem:[%s2] sm:$0xff]
      %v220 = vld [vmem:[%s2 + $0x8] sm:$0xff]
      %v221 = vld [vmem:[%s213] sm:$0xff]
      %v222 = vld [vmem:[%s213 + $0x8] sm:$0xff]
      %v223 = vld [vmem:[%s213 + $0x10] sm:$0xff]
      %v224 = vld [vmem:[%s213 + $0x18] sm:$0xff]
      %v225 = vld [vmem:[%s208] sm:$0xff]
      %v226 = vld [vmem:[%s208 + $0x8] sm:$0xff]
      %v227 = vld [vmem:[%s208 + $0x10] sm:$0xff]
      %v228 = vld [vmem:[%s208 + $0x18] sm:$0xff]
      %vm229 = vcmask 261120
      %v231 = vsel %vm229, %v219, 0
      %v234 = vsel %vm229, %v220, 0
      %236 = vmatpush.msra.mxu0 0.0
      %237 = vmatpush.msra.mxu0 0.0
      %238 = vmatpush.msra.mxu0 0.0
      %239 = vmatpush.msra.mxu0 0.0
      %240 = vmatpush.msra.mxu0 0.0
      %241 = vmatpush.msra.mxu0 0.0
      %242 = vmatpush.msra.mxu0 0.0
      %243 = vmatpush.msra.mxu0 0.0
      %244 = vmatpush.msra.mxu0 0.0
      %245 = vmatpush.msra.mxu0 0.0
      %246 = vmatpush.msra.mxu0 0.0
      %247 = vmatpush.msra.mxu0 0.0
      %248 = vmatpush.msra.mxu0 %v224
      %249 = vmatpush.msra.mxu0 %v223
      %250 = vmatpush.msra.mxu0 %v222
      %251 = vmatpush.msra.mxu0 %v221
      %252 = vmatmul.f32.gmra.mxu0 %v231
      %v253 = vpop.f32.mrf.mxu0
      %v254 = vadd.f32 0.0, %v253
      %255 = vmatmul.f32.gmra.mxu0 %v234
      %v256 = vpop.f32.mrf.mxu0
      %v257 = vadd.f32 0.0, %v256
      %258 = vdwg.mxu0
      %vm259 = vcmask 523264
      %v260 = vsel %vm259, %v254, -inf
      %v261 = vsel %vm259, %v257, -inf
      %v262 = vmax.f32 %v260, %v261
      %v263 = vrot.slane %v262, 4
      %v264 = vmax.f32 %v262, %v263
      %v265 = vrot.slane %v264, 2
      %v266 = vmax.f32 %v264, %v265
      %v267 = vrot.slane %v266, 1
      %v268 = vmax.f32 %v266, %v267
      %v269 = vsub.f32 %v254, %v268
      %v270 = vsub.f32 %v257, %v268
      %v271 = vmul.f32 %v269, 1.442695
      %v272 = vpow.pop %v271
      %v273 = vmul.f32 %v270, 1.442695
      %v274 = vpow.pop %v273
      %v275 = vsel %vm259, %v272, 0.0
      %v276 = vsel %vm259, %v274, 0.0
      %v277 = vadd.f32 %v275, %v276
      %v278 = vrot.slane %v277, 4
      %v279 = vadd.f32 %v277, %v278
      %v280 = vrot.slane %v279, 2
      %v281 = vadd.f32 %v279, %v280
      %v282 = vrot.slane %v281, 1
      %v283 = vadd.f32 %v281, %v282
      %v284 = vrcp.pop %v283
      %v285 = vmul.f32 %v272, %v284
      %v286 = vmul.f32 %v274, %v284
      %v288 = vsel %vm259, %v225, 0
      %v291 = vsel %vm259, %v226, 0
      %v294 = vsel %vm259, %v227, 0
      %v297 = vsel %vm259, %v228, 0
      %v300 = vsel %vm259, %v285, 0
      %v303 = vsel %vm259, %v286, 0
      %305 = vmatpush.xpose.msra.mxu0 0.0
      %306 = vmatpush.xpose.msra.mxu0 0.0
      %307 = vmatpush.xpose.msra.mxu0 0.0
      %308 = vmatpush.xpose.msra.mxu0 0.0
      %309 = vmatpush.xpose.msra.mxu0 0.0
      %310 = vmatpush.xpose.msra.mxu0 0.0
      %311 = vmatpush.xpose.msra.mxu0 0.0
      %312 = vmatpush.xpose.msra.mxu0 0.0
      %313 = vmatpush.xpose.msra.mxu0 0.0
      %314 = vmatpush.xpose.msra.mxu0 0.0
      %315 = vmatpush.xpose.msra.mxu0 0.0
      %316 = vmatpush.xpose.msra.mxu0 0.0
      %317 = vmatpush.xpose.msra.mxu0 0.0
      %318 = vmatpush.xpose.msra.mxu0 0.0
      %319 = vmatpush.xpose.msra.mxu0 %v303
      %320 = vmatpush.xpose.msra.mxu0 %v300
      %321 = vmatmul.f32.gmra.mxu0 %v288
      %v322 = vpop.f32.mrf.mxu0
      %v323 = vadd.f32 0.0, %v322
      %324 = vmatmul.f32.gmra.mxu0 %v291
      %v325 = vpop.f32.mrf.mxu0
      %v326 = vadd.f32 0.0, %v325
      %327 = vmatmul.f32.gmra.mxu0 %v294
      %v328 = vpop.f32.mrf.mxu0
      %v329 = vadd.f32 0.0, %v328
      %330 = vmatmul.f32.gmra.mxu0 %v297
      %v331 = vpop.f32.mrf.mxu0
      %v332 = vadd.f32 0.0, %v331
      %333 = vdwg.mxu0
      %v334 = vmul.f32 %v225, %v225
      %v335 = vmul.f32 %v226, %v226
      %v336 = vmul.f32 %v227, %v227
      %v337 = vmul.f32 %v228, %v228
      %v338 = vmul.f32 %v285, %v285
      %v339 = vmul.f32 %v286, %v286
      %v341 = vsel %vm259, %v334, 0
      %v344 = vsel %vm259, %v335, 0
      %v347 = vsel %vm259, %v336, 0
      %v350 = vsel %vm259, %v337, 0
      %v353 = vsel %vm259, %v338, 0
      %v356 = vsel %vm259, %v339, 0
      %358 = vmatpush.xpose.msra.mxu0 0.0
      %359 = vmatpush.xpose.msra.mxu0 0.0
      %360 = vmatpush.xpose.msra.mxu0 0.0
      %361 = vmatpush.xpose.msra.mxu0 0.0
      %362 = vmatpush.xpose.msra.mxu0 0.0
      %363 = vmatpush.xpose.msra.mxu0 0.0
      %364 = vmatpush.xpose.msra.mxu0 0.0
      %365 = vmatpush.xpose.msra.mxu0 0.0
      %366 = vmatpush.xpose.msra.mxu0 0.0
      %367 = vmatpush.xpose.msra.mxu0 0.0
      %368 = vmatpush.xpose.msra.mxu0 0.0
      %369 = vmatpush.xpose.msra.mxu0 0.0
      %370 = vmatpush.xpose.msra.mxu0 0.0
      %371 = vmatpush.xpose.msra.mxu0 0.0
      %372 = vmatpush.xpose.msra.mxu0 %v356
      %373 = vmatpush.xpose.msra.mxu0 %v353
      %374 = vmatmul.f32.gmra.mxu0 %v341
      %v375 = vpop.f32.mrf.mxu0
      %v376 = vadd.f32 0.0, %v375
      %377 = vmatmul.f32.gmra.mxu0 %v344
      %v378 = vpop.f32.mrf.mxu0
      %v379 = vadd.f32 0.0, %v378
      %380 = vmatmul.f32.gmra.mxu0 %v347
      %v381 = vpop.f32.mrf.mxu0
      %v382 = vadd.f32 0.0, %v381
      %383 = vmatmul.f32.gmra.mxu0 %v350
      %v384 = vpop.f32.mrf.mxu0
      %v385 = vadd.f32 0.0, %v384
      %386 = vdwg.mxu0
      %v388 = vsel %vm259, 1.0, 0
      %390 = vmatpush.xpose.msra.mxu0 0.0
      %391 = vmatpush.xpose.msra.mxu0 0.0
      %392 = vmatpush.xpose.msra.mxu0 0.0
      %393 = vmatpush.xpose.msra.mxu0 0.0
      %394 = vmatpush.xpose.msra.mxu0 0.0
      %395 = vmatpush.xpose.msra.mxu0 0.0
      %396 = vmatpush.xpose.msra.mxu0 0.0
      %397 = vmatpush.xpose.msra.mxu0 0.0
      %398 = vmatpush.xpose.msra.mxu0 0.0
      %399 = vmatpush.xpose.msra.mxu0 0.0
      %400 = vmatpush.xpose.msra.mxu0 0.0
      %401 = vmatpush.xpose.msra.mxu0 0.0
      %402 = vmatpush.xpose.msra.mxu0 0.0
      %403 = vmatpush.xpose.msra.mxu0 0.0
      %404 = vmatpush.xpose.msra.mxu0 %v303
      %405 = vmatpush.xpose.msra.mxu0 %v300
      %406 = vmatmul.f32.gmra.mxu0 %v388
      %v407 = vpop.f32.mrf.mxu0
      %v408 = vadd.f32 1e-07, %v407
      %409 = vdwg.mxu0
      %v410 = vmul.f32 %v408, 64.0
      %v411 = vperm.slane %v410, 0
      %v412 = vrcp.pop %v411
      %v413 = vmul.f32 %v411, %v412
      %v414 = vsub.f32 1.0, %v413
      %v415 = vmul.f32 %v412, %v414
      %v416 = vadd.f32 %v412, %v415
      %vm417 = vweird.f32 %v411
      %vm418 = vweird.f32 %v412
      %vm419 = vmor %vm417, %vm418
      %v420 = vsel %vm419, %v412, %v416
      %v421 = vand.u32 2147483647, %v411
      %vm422 = vcmp.eq.f32.partialorder %v421, 8.507059e+37
      %v423 = vand.u32 %v411, 2147483648
      %v424 = vor.u32 1.1754944e-38, %v423
      %v425 = vsel %vm422, %v424, %v420
      %v426 = vmul.f32 %v323, %v425
      %v427 = vmul.f32 %v326, %v425
      %v428 = vmul.f32 %v329, %v425
      %v429 = vmul.f32 %v332, %v425
      %v430 = vmul.f32 %v426, 2.0
      %v431 = vmul.f32 %v427, 2.0
      %v432 = vmul.f32 %v428, 2.0
      %v433 = vmul.f32 %v429, 2.0
      %v434 = vmul.f32 %v430, %v323
      %v435 = vmul.f32 %v431, %v326
      %v436 = vmul.f32 %v432, %v329
      %v437 = vmul.f32 %v433, %v332
      %v438 = vsub.f32 %v376, %v434
      %v439 = vsub.f32 %v379, %v435
      %v440 = vsub.f32 %v382, %v436
      %v441 = vsub.f32 %v385, %v437
      %v442 = vmul.f32 %v426, 64.0
      %v443 = vmul.f32 %v427, 64.0
      %v444 = vmul.f32 %v428, 64.0
      %v445 = vmul.f32 %v429, 64.0
      %v446 = vmul.f32 %v442, %v426
      %v447 = vmul.f32 %v443, %v427
      %v448 = vmul.f32 %v444, %v428
      %v449 = vmul.f32 %v445, %v429
      %v450 = vadd.f32 %v438, %v446
      %v451 = vadd.f32 %v439, %v447
      %v452 = vadd.f32 %v440, %v448
      %v453 = vadd.f32 %v441, %v449
      %v454 = vmax.f32 %v450, 0.0
      %v455 = vmax.f32 %v451, 0.0
      %v456 = vmax.f32 %v452, 0.0
      %v457 = vmax.f32 %v453, 0.0
      %v458 = vperm.slane %v408, 0
      %v459 = vrcp.pop %v458
      %v460 = vmul.f32 %v458, %v459
      %v461 = vsub.f32 1.0, %v460
      %v462 = vmul.f32 %v459, %v461
      %v463 = vadd.f32 %v459, %v462
      %vm464 = vweird.f32 %v458
      %vm465 = vweird.f32 %v459
      %vm466 = vmor %vm464, %vm465
      %v467 = vsel %vm466, %v459, %v463
      %v468 = vand.u32 2147483647, %v458
      %vm469 = vcmp.eq.f32.partialorder %v468, 8.507059e+37
      %v470 = vand.u32 %v458, 2147483648
      %v471 = vor.u32 1.1754944e-38, %v470
      %v472 = vsel %vm469, %v471, %v467
      %v473 = vmul.f32 %v454, %v472
      %v474 = vmul.f32 %v455, %v472
      %v475 = vmul.f32 %v456, %v472
      %v476 = vmul.f32 %v457, %v472
      %v477 = vrsqrt.pop %v473
      %v478 = vmul.f32 %v477, %v473
      %v479 = vmul.f32 %v478, %v477
      %v480 = vmul.f32 0.5, %v479
      %v481 = vsub.f32 1.5, %v480
      %v482 = vmul.f32 %v477, %v481
      %v483 = vmul.f32 %v473, %v482
      %vm484 = vcmp.eq.f32.partialorder %v473, inf
      %v485 = vsel %vm484, %v473, %v483
      %vm486 = vcmp.eq.f32.partialorder %v473, 0.0
      %v487 = vand.u32 %v473, 2147483648
      %v488 = vsel %vm486, %v487, %v485
      %v489 = vrsqrt.pop %v474
      %v490 = vmul.f32 %v489, %v474
      %v491 = vmul.f32 %v490, %v489
      %v492 = vmul.f32 0.5, %v491
      %v493 = vsub.f32 1.5, %v492
      %v494 = vmul.f32 %v489, %v493
      %v495 = vmul.f32 %v474, %v494
      %vm496 = vcmp.eq.f32.partialorder %v474, inf
      %v497 = vsel %vm496, %v474, %v495
      %vm498 = vcmp.eq.f32.partialorder %v474, 0.0
      %v499 = vand.u32 %v474, 2147483648
      %v500 = vsel %vm498, %v499, %v497
      %v501 = vrsqrt.pop %v475
      %v502 = vmul.f32 %v501, %v475
      %v503 = vmul.f32 %v502, %v501
      %v504 = vmul.f32 0.5, %v503
      %v505 = vsub.f32 1.5, %v504
      %v506 = vmul.f32 %v501, %v505
      %v507 = vmul.f32 %v475, %v506
      %vm508 = vcmp.eq.f32.partialorder %v475, inf
      %v509 = vsel %vm508, %v475, %v507
      %vm510 = vcmp.eq.f32.partialorder %v475, 0.0
      %v511 = vand.u32 %v475, 2147483648
      %v512 = vsel %vm510, %v511, %v509
      %v513 = vrsqrt.pop %v476
      %v514 = vmul.f32 %v513, %v476
      %v515 = vmul.f32 %v514, %v513
      %v516 = vmul.f32 0.5, %v515
      %v517 = vsub.f32 1.5, %v516
      %v518 = vmul.f32 %v513, %v517
      %v519 = vmul.f32 %v476, %v518
      %vm520 = vcmp.eq.f32.partialorder %v476, inf
      %v521 = vsel %vm520, %v476, %v519
      %vm522 = vcmp.eq.f32.partialorder %v476, 0.0
      %v523 = vand.u32 %v476, 2147483648
      %v524 = vsel %vm522, %v523, %v521
      %v525 = vadd.f32 %v488, 1e-05
      %v526 = vadd.f32 %v500, 1e-05
      %v527 = vadd.f32 %v512, 1e-05
      %v528 = vadd.f32 %v524, 1e-05
      %v529 = vrcp.pop %v525
      %v530 = vmul.f32 %v525, %v529
      %v531 = vsub.f32 1.0, %v530
      %v532 = vmul.f32 %v529, %v531
      %v533 = vadd.f32 %v529, %v532
      %vm534 = vweird.f32 %v525
      %vm535 = vweird.f32 %v529
      %vm536 = vmor %vm534, %vm535
      %v537 = vsel %vm536, %v529, %v533
      %v538 = vand.u32 2147483647, %v525
      %vm539 = vcmp.eq.f32.partialorder %v538, 8.507059e+37
      %v540 = vand.u32 %v525, 2147483648
      %v541 = vor.u32 1.1754944e-38, %v540
      %v542 = vsel %vm539, %v541, %v537
      %v543 = vmul.f32 1.0, %v542
      %v544 = vrcp.pop %v526
      %v545 = vmul.f32 %v526, %v544
      %v546 = vsub.f32 1.0, %v545
      %v547 = vmul.f32 %v544, %v546
      %v548 = vadd.f32 %v544, %v547
      %vm549 = vweird.f32 %v526
      %vm550 = vweird.f32 %v544
      %vm551 = vmor %vm549, %vm550
      %v552 = vsel %vm551, %v544, %v548
      %v553 = vand.u32 2147483647, %v526
      %vm554 = vcmp.eq.f32.partialorder %v553, 8.507059e+37
      %v555 = vand.u32 %v526, 2147483648
      %v556 = vor.u32 1.1754944e-38, %v555
      %v557 = vsel %vm554, %v556, %v552
      %v558 = vmul.f32 1.0, %v557
      %v559 = vrcp.pop %v527
      %v560 = vmul.f32 %v527, %v559
      %v561 = vsub.f32 1.0, %v560
      %v562 = vmul.f32 %v559, %v561
      %v563 = vadd.f32 %v559, %v562
      %vm564 = vweird.f32 %v527
      %vm565 = vweird.f32 %v559
      %vm566 = vmor %vm564, %vm565
      %v567 = vsel %vm566, %v559, %v563
      %v568 = vand.u32 2147483647, %v527
      %vm569 = vcmp.eq.f32.partialorder %v568, 8.507059e+37
      %v570 = vand.u32 %v527, 2147483648
      %v571 = vor.u32 1.1754944e-38, %v570
      %v572 = vsel %vm569, %v571, %v567
      %v573 = vmul.f32 1.0, %v572
      %v574 = vrcp.pop %v528
      %v575 = vmul.f32 %v528, %v574
      %v576 = vsub.f32 1.0, %v575
      %v577 = vmul.f32 %v574, %v576
      %v578 = vadd.f32 %v574, %v577
      %vm579 = vweird.f32 %v528
      %vm580 = vweird.f32 %v574
      %vm581 = vmor %vm579, %vm580
      %v582 = vsel %vm581, %v574, %v578
      %v583 = vand.u32 2147483647, %v528
      %vm584 = vcmp.eq.f32.partialorder %v583, 8.507059e+37
      %v585 = vand.u32 %v528, 2147483648
      %v586 = vor.u32 1.1754944e-38, %v585
      %v587 = vsel %vm584, %v586, %v582
      %v588 = vmul.f32 1.0, %v587
      %v589 = vmul.f32 %v426, %v543
      %v590 = vmul.f32 %v427, %v558
      %v591 = vmul.f32 %v428, %v573
      %v592 = vmul.f32 %v429, %v588
      %vm593 = vcmask 130048
      %v595 = vsel %vm593, %v543, 0
      %v598 = vsel %vm593, %v558, 0
      %v601 = vsel %vm593, %v573, 0
      %v604 = vsel %vm593, %v588, 0
      %v607 = vsel %vm593, %v589, 0
      %v610 = vsel %vm593, %v590, 0
      %v613 = vsel %vm593, %v591, 0
      %v616 = vsel %vm593, %v592, 0
      %618 = vmatpush.msra.mxu0 0.0
      %619 = vmatpush.msra.mxu0 0.0
      %620 = vmatpush.msra.mxu0 0.0
      %621 = vmatpush.msra.mxu0 0.0
      %622 = vmatpush.msra.mxu0 0.0
      %623 = vmatpush.msra.mxu0 0.0
      %624 = vmatpush.msra.mxu0 0.0
      %625 = vmatpush.msra.mxu0 0.0
      %626 = vmatpush.msra.mxu0 0.0
      %627 = vmatpush.msra.mxu0 0.0
      %628 = vmatpush.msra.mxu0 0.0
      %629 = vmatpush.msra.mxu0 0.0
      %630 = vmatpush.msra.mxu0 0.0
      %631 = vmatpush.msra.mxu0 0.0
      %632 = vmatpush.msra.mxu0 %v286
      %633 = vmatpush.msra.mxu0 %v285
      %634 = vmatmul.f32.gmra.mxu0 %v595
      %v635 = vpop.f32.mrf.mxu0
      %v636 = vadd.f32 0.0, %v635
      %637 = vmatmul.f32.gmra.mxu0 %v598
      %v638 = vpop.f32.mrf.mxu0
      %v639 = vadd.f32 0.0, %v638
      %640 = vmatmul.f32.gmra.mxu0 %v601
      %v641 = vpop.f32.mrf.mxu0
      %v642 = vadd.f32 0.0, %v641
      %643 = vmatmul.f32.gmra.mxu0 %v604
      %v644 = vpop.f32.mrf.mxu0
      %v645 = vadd.f32 0.0, %v644
      %646 = vmatmul.f32.gmra.mxu0 %v607
      %v647 = vpop.f32.mrf.mxu0
      %v648 = vadd.f32 0.0, %v647
      %649 = vmatmul.f32.gmra.mxu0 %v610
      %v650 = vpop.f32.mrf.mxu0
      %v651 = vadd.f32 0.0, %v650
      %652 = vmatmul.f32.gmra.mxu0 %v613
      %v653 = vpop.f32.mrf.mxu0
      %v654 = vadd.f32 0.0, %v653
      %655 = vmatmul.f32.gmra.mxu0 %v616
      %v656 = vpop.f32.mrf.mxu0
      %v657 = vadd.f32 0.0, %v656
      %658 = vdwg.mxu0
      %v659 = vmul.f32 %v225, %v636
      %v660 = vmul.f32 %v226, %v639
      %v661 = vmul.f32 %v227, %v642
      %v662 = vmul.f32 %v228, %v645
      %v663 = vsub.f32 %v659, %v648
      %v664 = vsub.f32 %v660, %v651
      %v665 = vsub.f32 %v661, %v654
      %v666 = vsub.f32 %v662, %v657
      %s667 = sld [smem:[#allocation2]]
      %v668 = vstv %s667
      %v669 = vmul.f32 %v668, %v663
      %v670 = vmul.f32 %v668, %v664
      %v671 = vmul.f32 %v668, %v665
      %v672 = vmul.f32 %v668, %v666
      %v673 = vadd.f32 %v225, %v669
      %v674 = vadd.f32 %v226, %v670
      %v675 = vadd.f32 %v227, %v671
      %v676 = vadd.f32 %v228, %v672
      %677 = vst.msk [vmem:[%s218] sm:$0xff] %vm259, %v673
      %678 = vst.msk [vmem:[%s218 + $0x8] sm:$0xff] %vm259, %v674
      %679 = vst.msk [vmem:[%s218 + $0x10] sm:$0xff] %vm259, %v675
      %680 = vst.msk [vmem:[%s218 + $0x18] sm:$0xff] %vm259, %v676
      %p681 = scmp.lt.s32.totalorder %s16, 1
      %s682 = scalar_select %p681, %s16, 1
      %s683 = smul.addr %s682, 4
      %s684 = smul.addr %s683, 8
      %s685 = scalar_lea.vmem %s4, %s684
      // Predicated region
      $region37: #{attention_normalization.1} parent=35 // pred_check
        %p686 = pneg %p128
      $region38: #{attention_normalization.1} parent=35 // pred_check_branch
        %688 = sbr.rel (%p686) target = $region40
      $region39: #{attention_normalization.1} parent=35 // pred_region
        _
      $region40: #{attention_normalization.1} parent=35 // pred_fallthru
        _
    $region36: #{attention_normalization.1} parent=5 // pred_fallthru
      _
    %p689 = scmp.le.s32.totalorder 2, %s11
    // Predicated region
    $region41: #{attention_normalization.1} parent=5 // pred_check
      %p690 = pneg %p689
    $region42: #{attention_normalization.1} parent=5 // pred_check_branch
      %692 = sbr.rel (%p690) target = $region44
    $region43: #{attention_normalization.1} parent=5 // pred_region
      %s693 = ssub.s32 %s11, 2
      // Predicated region
      $region45: #{attention_normalization.1} parent=43 // pred_check
        %p694 = pneg %p134
      $region46: #{attention_normalization.1} parent=43 // pred_check_branch
        %696 = sbr.rel (%p694) target = $region48
      $region47: #{attention_normalization.1} parent=43 // pred_region
        %p697 = scmp.lt.s32.totalorder %s17, 1
        %s698 = scalar_select %p697, %s17, 1
        %s699 = smul.addr %s698, 4
        %s700 = smul.addr %s699, 8
        %s701 = scalar_lea.vmem %s4, %s700
      $region48: #{attention_normalization.1} parent=43 // pred_fallthru
        _
    $region44: #{attention_normalization.1} parent=5 // pred_fallthru
      _
  $region6: #{attention_normalization.1} parent=0 // loop_footer
    %s15 = sadd.s32 1, %s11
  $region7: #{attention_normalization.1} parent=0 // loop_footer_branch
    %10 = sbr.rel target = $region3
  $region8: #{attention_normalization.1} parent=0 // loop_exit
    _

</llo_original>
